<compile_context>
chip_gen: v5e
topology: v5e:2x2
jax: 0.10.0
libtpu: 0.0.40
codegen_flags: <defaults>
</compile_context>

<pallas_src>
import functools

import jax
import jax.numpy as jnp
from jax.experimental import pallas as pl
from jax.experimental.pallas import tpu as pltpu


def _par_concat_kernel(x_ref, y_ref, o_ref):
    """x_ref: (1, TS, D1), y_ref: (1, 1, D2), o_ref: (1, TS, D1 + D2)."""
    ts = x_ref.shape[1]
    d1 = x_ref.shape[2]
    d2 = y_ref.shape[2]
    # Left slice of the output tile: straight copy of x.
    o_ref[:, :, :d1] = x_ref[...]
    # Right slice: y broadcast along the sequence (sublane) axis.
    o_ref[:, :, d1:] = jnp.broadcast_to(y_ref[...], (1, ts, d2))


def _pick_seq_tile(seq_len, bytes_per_row, budget_bytes=2 * 1024 * 1024):
    """Largest multiple-of-8 tile that divides seq_len and fits the VMEM budget."""
    max_rows = max(8, budget_bytes // max(bytes_per_row, 1))
    if seq_len <= max_rows:
        return seq_len
    best = None
    for ts in range(8, (max_rows // 8) * 8 + 1, 8):
        if seq_len % ts == 0:
            best = ts
    # Fall back to the full sequence (full-dim block is always legal).
    return best if best is not None else seq_len


@functools.partial(jax.jit, static_argnames=("seq_tile",))
def par_concat(x, y, *, seq_tile=None):
    """x: (B, S, D1), y: (B, D2) -> (B, S, D1 + D2), matching ParConcatenator.forward."""
    B, S, D1 = x.shape
    By, D2 = y.shape
    assert B == By, "batch dims of x and y must match"
    y = y.astype(x.dtype)
    Dout = D1 + D2

    ts = seq_tile
    if ts is None:
        # Per grid step: x tile + out tile, double-buffered by the pipeline.
        bytes_per_row = (D1 + Dout) * x.dtype.itemsize * 2
        ts = _pick_seq_tile(S, bytes_per_row)
    assert S % ts == 0 and (ts == S or ts % 8 == 0), "bad sequence tile"

    y3 = y.reshape(B, 1, D2)  # metadata-only reshape, no extra HBM traffic
    grid = (B, S // ts)

    out = pl.pallas_call(
        _par_concat_kernel,
        out_shape=jax.ShapeDtypeStruct((B, S, Dout), x.dtype),
        grid_spec=pltpu.PrefetchScalarGridSpec(
            num_scalar_prefetch=0,
            grid=grid,
            in_specs=[
                pl.BlockSpec((1, ts, D1), lambda b, s: (b, s, 0)),  # x sequence tile
                pl.BlockSpec((1, 1, D2), lambda b, s: (b, 0, 0)),   # y row (resident over s)
            ],
            out_specs=pl.BlockSpec((1, ts, Dout), lambda b, s: (b, s, 0)),
        ),
        compiler_params=pltpu.CompilerParams(
            dimension_semantics=("parallel", "parallel"),
        ),
    )(x, y3)
    return out


if __name__ == "__main__":
    B, S, D1, D2 = 2, 8, 16, 8

    key = jax.random.PRNGKey(0)
    kx, ky = jax.random.split(key)
    x = jax.random.normal(kx, (B, S, D1), jnp.float32)
    y = jax.random.normal(ky, (B, D2), jnp.float32)

    out = par_concat(x, y)
    out = jax.block_until_ready(out)

    # Pure-JAX reference matching torch.concat((x, y.unsqueeze(1).repeat(1, S, 1)), axis=2)
    ref = jnp.concatenate([x, jnp.broadcast_to(y[:, None, :], (B, S, D2))], axis=2)

    assert out.shape == (B, S, D1 + D2)
    assert jnp.array_equal(out, ref), "mismatch vs reference"

    print("KERNEL_OK")
</pallas_src>

<mosaic_0001>
module attributes {stable_mosaic.version = 11 : i64} {
  func.func @_par_concat_kernel(%arg0: i32, %arg1: i32, %arg2: memref<1x8x16xf32, #tpu.memory_space<vmem>>, %arg3: memref<1x1x8xf32, #tpu.memory_space<vmem>>, %arg4: memref<1x8x24xf32, #tpu.memory_space<vmem>>) attributes {dimension_semantics = [#tpu.dimension_semantics<parallel>, #tpu.dimension_semantics<parallel>], iteration_bounds = array<i64: 2, 1>, scalar_prefetch = 0 : i64, scratch_operands = 0 : i64, tpu.core_type = #tpu.core_type<tc>, window_params = [{transform_indices = @transform_0, window_bounds = array<i64: 1, 8, 16>}, {transform_indices = @transform_1, window_bounds = array<i64: 1, 1, 8>}, {transform_indices = @transform_2, window_bounds = array<i64: 1, 8, 24>}]} {
    %c0 = arith.constant 0 : index
    %c0_0 = arith.constant 0 : index
    %c0_1 = arith.constant 0 : index
    %0 = vector.load %arg2[%c0, %c0_0, %c0_1] : memref<1x8x16xf32, #tpu.memory_space<vmem>>, vector<1x8x16xf32>
    %c0_2 = arith.constant 0 : index
    %c0_3 = arith.constant 0 : index
    %c0_4 = arith.constant 0 : index
    %1 = vector.load %arg4[%c0_2, %c0_3, %c0_4] : memref<1x8x24xf32, #tpu.memory_space<vmem>>, vector<1x8x16xf32>
    tpu.vector_store %arg4[%c0_2, %c0_3, %c0_4], %0 {strides = array<i32>} : memref<1x8x24xf32, #tpu.memory_space<vmem>>, vector<1x8x16xf32>,
    %c0_5 = arith.constant 0 : index
    %c0_6 = arith.constant 0 : index
    %c0_7 = arith.constant 0 : index
    %2 = vector.load %arg3[%c0_5, %c0_6, %c0_7] : memref<1x1x8xf32, #tpu.memory_space<vmem>>, vector<1x1x8xf32>
    %3 = vector.shape_cast %2 : vector<1x1x8xf32> to vector<1x1x8xf32>
    %4 = vector.broadcast %3 : vector<1x1x8xf32> to vector<1x8x8xf32>
    %c0_8 = arith.constant 0 : index
    %c0_9 = arith.constant 0 : index
    %c16 = arith.constant 16 : index
    %5 = vector.load %arg4[%c0_8, %c0_9, %c16] : memref<1x8x24xf32, #tpu.memory_space<vmem>>, vector<1x8x8xf32>
    tpu.vector_store %arg4[%c0_8, %c0_9, %c16], %4 {strides = array<i32>} : memref<1x8x24xf32, #tpu.memory_space<vmem>>, vector<1x8x8xf32>,
    return
  }
  func.func @transform_0(%arg0: i32, %arg1: i32) -> (i32, i32, i32) {
    %c0_i32 = arith.constant 0 : i32
    %c0_i32_0 = arith.constant 0 : i32
    return %arg0, %arg1, %c0_i32 : i32, i32, i32
  }
  func.func @transform_1(%arg0: i32, %arg1: i32) -> (i32, i32, i32) {
    %c0_i32 = arith.constant 0 : i32
    %c0_i32_0 = arith.constant 0 : i32
    %c0_i32_1 = arith.constant 0 : i32
    return %arg0, %c0_i32, %c0_i32_0 : i32, i32, i32
  }
  func.func @transform_2(%arg0: i32, %arg1: i32) -> (i32, i32, i32) {
    %c0_i32 = arith.constant 0 : i32
    %c0_i32_0 = arith.constant 0 : i32
    return %arg0, %arg1, %c0_i32 : i32, i32, i32
  }
}

</mosaic_0001>

<llo_original>
// kernel: par_concat.1
$region0: #{par_concat.1}
  #allocation0 [shape = 'u32[]', space=smem, size = 0x4, offset = 0x4, fixed_abs, tag = 'smem constant byte address 0x4 - core index']
  #allocation1 [shape = 'u32[72,128]{1,0:T(1,128)}', space=vmem, size = 0x9000, scoped, tag = 'internal scratch']
  %s0 = inlined_call_operand.hbm [shape: f32[2,8,16], index: 0, kind: input, shape index: {}]
  %s1 = inlined_call_operand.hbm [shape: f32[2,1,8], index: 1, kind: input, shape index: {}]
  %s2 = inlined_call_operand.hbm [shape: f32[2,8,24], index: 2, kind: output, shape index: {}]
  %s3 = sld [smem:[#allocation0]]
  $region49: #{par_concat.1} parent=0
    _
  %s5 = ssub.s32 1, %s3
  %s6 = scalar_select 0, %s5, %s3
  $region1: #{par_concat.1} parent=0
    #allocation2 [shape = 'u8[8192]{0}', space=vmem, size = 0x2000, scoped, tag = 'input window, operand 0']
    #allocation3 [shape = 's32[2]{0}', space=sflag, size = 0x8, scoped, tag = 'scoped memory for par_concat.1']
    #allocation4 [shape = 's32[2]{0}', space=sflag, size = 0x8, scoped, tag = 'scoped memory for par_concat.1']
    #allocation5 [shape = 'u8[1024]{0}', space=vmem, size = 0x400, scoped, tag = 'input window, operand 1']
    #allocation6 [shape = 's32[2]{0}', space=sflag, size = 0x8, scoped, tag = 'scoped memory for par_concat.1']
    #allocation7 [shape = 'u8[8192]{0}', space=vmem, size = 0x2000, scoped, tag = 'output window, operand 0']
    %7 = vsyncpa [#allocation3], 0
    %s8 = scalar_lea.sflag [#allocation3], 1
    %9 = vsyncpa %s8, 0
    %10 = vsyncpa [#allocation6], 0
    %s11 = scalar_lea.sflag [#allocation6], 1
    %12 = vsyncpa %s11, 0
    %13 = vsyncpa [#allocation4], 0
    %s14 = scalar_lea.sflag [#allocation4], 1
    %15 = vsyncpa %s14, 0
    loop: start=0, step=1, limit=4
    $region2: #{par_concat.1} parent=1 // loop_pre_header
      _
    $region3: #{par_concat.1} parent=1 // loop_header
      %s17 = sphi 0, %s21
      %p18 = scmp.ge.s32.totalorder %s17, 4
      %s24 = sphi 0, %s36
      %s25 = sphi 0, %s32
      %s26 = sphi 0, %s24
      %s27 = sphi 0, %s25
      %s28 = sphi 0, %s26
      %s29 = sphi 0, %s27
      %s41 = sphi 0, %s43
      %s44 = sphi 0, %s41
      %s45 = sphi 0, %s44
      %s61 = sphi 0, %s45
      %s67 = sphi 0, %s69
      %s70 = sphi 0, %s67
      %s71 = sphi 0, %s70
      %s87 = sphi 0, %s71
      %s95 = sphi 0, %s97
      %s98 = sphi 0, %s95
      %s99 = sphi 0, %s98
      %s115 = sphi 0, %s99
    $region4: #{par_concat.1} parent=1 // loop_header_branch
      %20 = sbr.rel (%p18) target = $region8
    $region5: #{par_concat.1} parent=1 // loop_body
      %s22 = ssub.s32 %s17, 1
      %s23 = ssub.s32 %s17, 2
      %s30 = sadd.s32 1, %s25
      %p31 = scmp.ge.s32.totalorder %s30, 1
      %s32 = scalar_select %p31, 0, %s30
      %s33 = sadd.s32 1, %s24
      %s34 = scalar_select %p31, %s33, %s24
      %p35 = scmp.ge.s32.totalorder %s34, 2
      %s36 = scalar_select %p35, 0, %s34
      %s37 = ssub.s32 %s24, %s36
      %s38 = ssub.s32 %s25, %s32
      %s39 = sor.u32 %s37, %s38
      %p40 = scmp.eq.s32.totalorder %s39, 0
      %s42 = sadd.s32 %s41, 1
      %s43 = scalar_select %p40, %s41, %s42
      %p46 = pneg %p40
      %p47 = scmp.eq.s32.totalorder %s17, 1
      %p48 = por %p46, %p47
      %p49 = scmp.ne.s32.totalorder %s41, %s44
      %p50 = scmp.eq.s32.totalorder %s17, 0
      %p51 = por %p49, %p50
      %p52 = scmp.ne.s32.totalorder %s41, %s44
      %p53 = scmp.eq.s32.totalorder %s22, 1
      %p54 = por %p52, %p53
      %p55 = scmp.ne.s32.totalorder %s44, %s45
      %p56 = scmp.eq.s32.totalorder %s22, 0
      %p57 = por %p55, %p56
      %p58 = scmp.ne.s32.totalorder %s44, %s45
      %p59 = scmp.eq.s32.totalorder %s23, 1
      %p60 = por %p58, %p59
      %p62 = scmp.ne.s32.totalorder %s45, %s61
      %p63 = scmp.eq.s32.totalorder %s23, 0
      %p64 = por %p62, %p63
      %s65 = ssub.s32 %s24, %s36
      %p66 = scmp.eq.s32.totalorder %s65, 0
      %s68 = sadd.s32 %s67, 1
      %s69 = scalar_select %p66, %s67, %s68
      %p72 = pneg %p66
      %p73 = scmp.eq.s32.totalorder %s17, 1
      %p74 = por %p72, %p73
      %p75 = scmp.ne.s32.totalorder %s67, %s70
      %p76 = scmp.eq.s32.totalorder %s17, 0
      %p77 = por %p75, %p76
      %p78 = scmp.ne.s32.totalorder %s67, %s70
      %p79 = scmp.eq.s32.totalorder %s22, 1
      %p80 = por %p78, %p79
      %p81 = scmp.ne.s32.totalorder %s70, %s71
      %p82 = scmp.eq.s32.totalorder %s22, 0
      %p83 = por %p81, %p82
      %p84 = scmp.ne.s32.totalorder %s70, %s71
      %p85 = scmp.eq.s32.totalorder %s23, 1
      %p86 = por %p84, %p85
      %p88 = scmp.ne.s32.totalorder %s71, %s87
      %p89 = scmp.eq.s32.totalorder %s23, 0
      %p90 = por %p88, %p89
      %s91 = ssub.s32 %s24, %s36
      %s92 = ssub.s32 %s25, %s32
      %s93 = sor.u32 %s91, %s92
      %p94 = scmp.eq.s32.totalorder %s93, 0
      %s96 = sadd.s32 %s95, 1
      %s97 = scalar_select %p94, %s95, %s96
      %p100 = pneg %p94
      %p101 = scmp.eq.s32.totalorder %s17, 1
      %p102 = por %p100, %p101
      %p103 = scmp.ne.s32.totalorder %s95, %s98
      %p104 = scmp.eq.s32.totalorder %s17, 0
      %p105 = por %p103, %p104
      %p106 = scmp.ne.s32.totalorder %s95, %s98
      %p107 = scmp.eq.s32.totalorder %s22, 1
      %p108 = por %p106, %p107
      %p109 = scmp.ne.s32.totalorder %s98, %s99
      %p110 = scmp.eq.s32.totalorder %s22, 0
      %p111 = por %p109, %p110
      %p112 = scmp.ne.s32.totalorder %s98, %s99
      %p113 = scmp.eq.s32.totalorder %s23, 1
      %p114 = por %p112, %p113
      %p116 = scmp.ne.s32.totalorder %s99, %s115
      %p117 = scmp.eq.s32.totalorder %s23, 0
      %p118 = por %p116, %p117
      %p119 = scmp.le.s32.totalorder 1, %s17
      %p120 = scmp.lt.s32.totalorder %s17, 3
      %p121 = pnand %p119, %p120
      %p122 = pneg %p121
      // Predicated region
      $region9: #{par_concat.1} parent=5 // pred_check
        _
      $region10: #{par_concat.1} parent=5 // pred_check_branch
        %124 = sbr.rel (%p121) target = $region12
      $region11: #{par_concat.1} parent=5 // pred_region
        %s125 = ssub.s32 %s17, 1
      $region12: #{par_concat.1} parent=5 // pred_fallthru
        _
      %p126 = scmp.lt.s32.totalorder %s17, 2
      // Predicated region
      $region13: #{par_concat.1} parent=5 // pred_check
        %p127 = pneg %p126
      $region14: #{par_concat.1} parent=5 // pred_check_branch
        %129 = sbr.rel (%p127) target = $region16
      $region15: #{par_concat.1} parent=5 // pred_region
        // Predicated region
        $region17: #{par_concat.1} parent=15 // pred_check
          %p130 = pneg %p51
        $region18: #{par_concat.1} parent=15 // pred_check_branch
          %132 = sbr.rel (%p130) target = $region20
        $region19: #{par_concat.1} parent=15 // pred_region
          %s133 = sand.u32 %s41, 1
          %s134 = scalar_lea.sflag [#allocation3], %s133
          %s135 = sand.u32 %s41, 1
          %s136 = smul.addr %s135, 8
          %s137 = scalar_lea.vmem [#allocation2], %s136
          %139 = vsyncadd %s134, 0
          %s140 = sadd.s32 %s25, %s24
          %s141 = smul.addr %s140, 8
          %s142 = scalar_lea.hbm %s0, %s141
          %s144 = sshll.u32 %s142, 4
          %s145 = int_to_ptr.hbm [resolvable:$true] %s144
          %s146 = sshll.u32 %s137, 4
          %s147 = int_to_ptr.vmem [resolvable:$true] %s146
          %149 = dma.hbm_to_vmem [thread:$0]  %s145, 128, %s147, %s134
        $region20: #{par_concat.1} parent=15 // pred_fallthru
          _
        // Predicated region
        $region21: #{par_concat.1} parent=15 // pred_check
          %p150 = pneg %p77
        $region22: #{par_concat.1} parent=15 // pred_check_branch
          %152 = sbr.rel (%p150) target = $region24
        $region23: #{par_concat.1} parent=15 // pred_region
          %s153 = sand.u32 %s67, 1
          %s154 = scalar_lea.sflag [#allocation6], %s153
          %s155 = sand.u32 %s67, 1
          %s156 = scalar_lea.vmem [#allocation5], %s155
          %158 = vsyncadd %s154, 0
          %s159 = scalar_lea.hbm %s1, %s24
          %s161 = sshll.u32 %s159, 4
          %s162 = int_to_ptr.hbm [resolvable:$true] %s161
          %s163 = sshll.u32 %s156, 4
          %s164 = int_to_ptr.vmem [resolvable:$true] %s163
          %166 = dma.hbm_to_vmem [thread:$0]  %s162, 16, %s164, %s154
        $region24: #{par_concat.1} parent=15 // pred_fallthru
          _
      $region16: #{par_concat.1} parent=5 // pred_fallthru
        _
      %p167 = scmp.le.s32.totalorder 1, %s17
      %p168 = scmp.lt.s32.totalorder %s17, 3
      %p169 = pnand %p167, %p168
      %p170 = pneg %p169
      // Predicated region
      $region25: #{par_concat.1} parent=5 // pred_check
        _
      $region26: #{par_concat.1} parent=5 // pred_check_branch
        %172 = sbr.rel (%p169) target = $region28
      $region27: #{par_concat.1} parent=5 // pred_region
        %s173 = ssub.s32 %s17, 1
        %s174 = sand.u32 %s44, 1
        %s175 = scalar_lea.sflag [#allocation3], %s174
        %s176 = sand.u32 %s44, 1
        %s177 = smul.addr %s176, 8
        %s178 = scalar_lea.vmem [#allocation2], %s177
        // Predicated region
        $region29: #{par_concat.1} parent=27 // pred_check
          %p179 = pneg %p57
        $region30: #{par_concat.1} parent=27 // pred_check_branch
          %181 = sbr.rel (%p179) target = $region32
        $region31: #{par_concat.1} parent=27 // pred_region
          %183 = dma.done %s175, 128
        $region32: #{par_concat.1} parent=27 // pred_fallthru
          _
        %s184 = sand.u32 %s70, 1
        %s185 = scalar_lea.sflag [#allocation6], %s184
        %s186 = sand.u32 %s70, 1
        %s187 = scalar_lea.vmem [#allocation5], %s186
        // Predicated region
        $region33: #{par_concat.1} parent=27 // pred_check
          %p188 = pneg %p83
        $region34: #{par_concat.1} parent=27 // pred_check_branch
          %190 = sbr.rel (%p188) target = $region36
        $region35: #{par_concat.1} parent=27 // pred_region
          %192 = dma.done %s185, 16
        $region36: #{par_concat.1} parent=27 // pred_fallthru
          _
        %s193 = sand.u32 %s44, 1
        %s194 = scalar_lea.sflag [#allocation3], %s193
        %s195 = sand.u32 %s44, 1
        %s196 = smul.addr %s195, 8
        %s197 = scalar_lea.vmem [#allocation2], %s196
        %p198 = pneg %p57
        %p199 = pneg %p54
        %s200 = sand.u32 %s70, 1
        %s201 = scalar_lea.sflag [#allocation6], %s200
        %s202 = sand.u32 %s70, 1
        %s203 = scalar_lea.vmem [#allocation5], %s202
        %p204 = pneg %p83
        %p205 = pneg %p80
        %p206 = pneg %p111
        %p207 = pneg %p108
        %s208 = sand.u32 %s98, 1
        %s209 = scalar_lea.sflag [#allocation4], %s208
        %s210 = sand.u32 %s98, 1
        %s211 = smul.addr %s210, 8
        %s212 = scalar_lea.vmem [#allocation7], %s211
        %v213 = vld [vmem:[%s178] sm:$0xff]
        %vm214 = vcmask 130048
        %215 = vst.msk [vmem:[%s212] sm:$0xff] %vm214, %v213
        %v216 = vld [vmem:[%s187] sm:$0x1]
        %v218 = vperm.slane %v216, 0
        %219 = vrot.lane.b32.xlu0 %v218, 16
        %v220 = vpop.permute.xlu0 %219
        %vm222 = vcmask 195712
        %223 = vst.msk [vmem:[%s212] sm:$0xff] %vm222, %v220
        %s224 = sand.u32 %s98, 1
        %s225 = scalar_lea.sflag [#allocation4], %s224
        %s226 = sand.u32 %s98, 1
        %s227 = smul.addr %s226, 8
        %s228 = scalar_lea.vmem [#allocation7], %s227
        // Predicated region
        $region37: #{par_concat.1} parent=27 // pred_check
          %p229 = pneg %p108
        $region38: #{par_concat.1} parent=27 // pred_check_branch
          %231 = sbr.rel (%p229) target = $region40
        $region39: #{par_concat.1} parent=27 // pred_region
          %233 = vsyncadd %s225, 0
          %s234 = sadd.s32 %s27, %s26
          %s235 = smul.addr %s234, 8
          %s236 = scalar_lea.hbm %s2, %s235
          %s238 = sshll.u32 %s228, 4
          %s239 = int_to_ptr.vmem [resolvable:$true] %s238
          %s240 = sshll.u32 %s236, 4
          %s241 = int_to_ptr.hbm [resolvable:$true] %s240
          %243 = dma.vmem_to_hbm [thread:$0]  %s239, 128, %s241, %s225
        $region40: #{par_concat.1} parent=27 // pred_fallthru
          _
      $region28: #{par_concat.1} parent=5 // pred_fallthru
        _
      %p244 = scmp.le.s32.totalorder 2, %s17
      // Predicated region
      $region41: #{par_concat.1} parent=5 // pred_check
        %p245 = pneg %p244
      $region42: #{par_concat.1} parent=5 // pred_check_branch
        %247 = sbr.rel (%p245) target = $region44
      $region43: #{par_concat.1} parent=5 // pred_region
        %s248 = ssub.s32 %s17, 2
        // Predicated region
        $region45: #{par_concat.1} parent=43 // pred_check
          %p249 = pneg %p114
        $region46: #{par_concat.1} parent=43 // pred_check_branch
          %251 = sbr.rel (%p249) target = $region48
        $region47: #{par_concat.1} parent=43 // pred_region
          %s252 = sand.u32 %s99, 1
          %s253 = scalar_lea.sflag [#allocation4], %s252
          %s254 = sand.u32 %s99, 1
          %s255 = smul.addr %s254, 8
          %s256 = scalar_lea.vmem [#allocation7], %s255
          %258 = dma.done %s253, 128
        $region48: #{par_concat.1} parent=43 // pred_fallthru
          _
      $region44: #{par_concat.1} parent=5 // pred_fallthru
        _
    $region6: #{par_concat.1} parent=1 // loop_footer
      %s21 = sadd.s32 1, %s17
    $region7: #{par_concat.1} parent=1 // loop_footer_branch
      %16 = sbr.rel target = $region3
    $region8: #{par_concat.1} parent=1 // loop_exit
      _
    %259 = vsyncpa [#allocation3], 1
    %s260 = scalar_lea.sflag [#allocation3], 1
    %261 = vsyncpa %s260, 1
    %262 = vsyncpa [#allocation6], 1
    %s263 = scalar_lea.sflag [#allocation6], 1
    %264 = vsyncpa %s263, 1
    %265 = vsyncpa [#allocation4], 1
    %s266 = scalar_lea.sflag [#allocation4], 1
    %267 = vsyncpa %s266, 1

</llo_original>
